<compile_context>
chip_gen: v7x
topology: tpu7x:2x2x1
jax: 0.10.0
libtpu: 0.0.40
codegen_flags: <defaults>
</compile_context>

<pallas_src>
import functools

import jax
import jax.numpy as jnp
from jax import lax
from jax.experimental import pallas as pl
from jax.experimental.pallas import tpu as pltpu

_LANES = 128
_SUBLANES = 8
# 3 f32 streams x 2 buffers x block_rows*128*4B; keep comfortably under the
# 32 MiB default scoped VMEM on v7x (64 MiB physical).
_MAX_BLOCK_ROWS_HARD_CAP = 4096


def _round_up(x, m):
    return ((x + m - 1) // m) * m


def _int_pow(x, k):
    """x**k for non-negative integer k via repeated multiplication (VALU only)."""
    if k == 0:
        return jnp.ones_like(x)
    result = None
    base = x
    while k:
        if k & 1:
            result = base if result is None else result * base
        k >>= 1
        if k:
            base = base * base
    return result


def _focal_terms(x, t, gamma):
    """Per-element stable BCE-with-logits and focal factor (1-pt)**gamma (f32)."""
    e = jnp.exp(-jnp.abs(x))                           # single EUP exp, reused
    bce = jnp.maximum(x, 0.0) - x * t + jnp.log1p(e)   # stable BCE-with-logits
    denom = 1.0 + e
    inv = 1.0 / denom                                  # EXACT division (approx recip broke 'none')
    p_num = jnp.where(x >= 0.0, 1.0, e)                # sigmoid numerator
    probs = p_num * inv                                # sigmoid(x)
    one_m_probs = (denom - p_num) * inv                # 1-sigmoid(x), cancellation-free
    # 1 - pt == probs*(1-t) + (1-probs)*t
    one_minus_pt = probs * (1.0 - t) + one_m_probs * t
    g = float(gamma)
    if g.is_integer() and 0 <= g <= 16:
        focal = _int_pow(one_minus_pt, int(g))         # VALU multiplies only
    else:
        focal = jnp.power(jnp.maximum(one_minus_pt, 0.0), g)
    return bce, focal


def _focal_sums_kernel(logits_ref, targets_ref, out_ref, acc_ref, *,
                       gamma, scale_bce, scale_focal, n_valid, needs_mask,
                       block_rows):
    i = pl.program_id(0)
    last = pl.num_programs(0) - 1

    @pl.when(i == 0)
    def _init():
        acc_ref[0] = 0.0
        acc_ref[1] = 0.0

    x = logits_ref[...].astype(jnp.float32)
    t = targets_ref[...].astype(jnp.float32)
    bce, focal = _focal_terms(x, t, gamma)

    if needs_mask:  # static: only emit mask code if padding / ragged rows exist
        # Only the final block can contain lane-pad or out-of-bounds rows;
        # gate the iota/select masking onto it (unmasked fast path elsewhere).
        @pl.when(i == last)
        def _masked_accum():
            shape = x.shape
            row = lax.broadcasted_iota(jnp.int32, shape, 0) + i * block_rows
            lane = lax.broadcasted_iota(jnp.int32, shape, 1)
            valid = (row * _LANES + lane) < n_valid
            # select (not multiply) so garbage NaN/Inf in the padded region
            # never reaches the sums.
            acc_ref[0] += jnp.sum(jnp.where(valid, bce, 0.0))
            acc_ref[1] += jnp.sum(jnp.where(valid, focal, 0.0))

        @pl.when(i != last)
        def _fast_accum():
            acc_ref[0] += jnp.sum(bce)
            acc_ref[1] += jnp.sum(focal)
    else:
        acc_ref[0] += jnp.sum(bce)
        acc_ref[1] += jnp.sum(focal)

    @pl.when(i == last)
    def _finalize():
        # mean: (sum_bce/n) * (alpha*sum_focal/n); sum: sum_bce * (alpha*sum_focal)
        # Scales folded per-accumulator so the product can't overflow f32.
        out_ref[0] = (scale_bce * acc_ref[0]) * (scale_focal * acc_ref[1])


def _focal_none_kernel(logits_ref, targets_ref, out_ref, *, gamma, alpha):
    x = logits_ref[...].astype(jnp.float32)
    t = targets_ref[...].astype(jnp.float32)
    bce, focal = _focal_terms(x, t, gamma)
    out_ref[...] = (alpha * (focal * bce)).astype(out_ref.dtype)


class FocalLoss:
    """Pallas-TPU port of the PyTorch FocalLoss module (forward only)."""

    def __init__(self, alpha, gamma, reduction="mean", max_block_rows=2048):
        self.alpha = float(alpha)
        self.gamma = float(gamma)
        self.reduction = reduction
        mbr = max(_SUBLANES, min(int(max_block_rows), _MAX_BLOCK_ROWS_HARD_CAP))
        # block rows must stay a multiple of the 8-sublane tile when < rows
        self.max_block_rows = _round_up(mbr, _SUBLANES)

    def _pack(self, logits, targets):
        """Flatten to a lane-dense (rows, 128) view.

        Only the last partial row (< 128 elements) is padded; rows are NOT
        padded up to a block multiple — the ragged final grid block is handled
        by Pallas (masked in-kernel for reductions, dropped writes for 'none').
        """
        n = int(logits.size)
        rows = max(1, (n + _LANES - 1) // _LANES)
        n_lane = rows * _LANES

        def prep(a):
            a = a.reshape(-1)
            if n_lane != n:
                a = jnp.pad(a, (0, n_lane - n))
            return a.reshape(rows, _LANES)

        # full-dim block (grid=1) when small; otherwise multiple-of-8 tiles.
        block_rows = min(rows, self.max_block_rows)
        return prep(logits), prep(targets), n, rows, block_rows

    def __call__(self, logits, targets):
        assert logits.shape == targets.shape
        x2d, t2d, n, rows, block_rows = self._pack(logits, targets)
        grid_blocks = pl.cdiv(rows, block_rows)
        grid = (grid_blocks,)
        padded = rows * _LANES
        itemsize = int(jnp.dtype(logits.dtype).itemsize)
        in_bytes = 2 * padded * itemsize

        tile_spec = pl.BlockSpec((block_rows, _LANES), lambda i: (i, 0))

        if self.reduction == "none":
            out2d = pl.pallas_call(
                functools.partial(_focal_none_kernel,
                                  gamma=self.gamma, alpha=self.alpha),
                out_shape=jax.ShapeDtypeStruct((rows, _LANES), logits.dtype),
                grid=grid,
                in_specs=[tile_spec, tile_spec],
                out_specs=tile_spec,
                compiler_params=pltpu.CompilerParams(
                    dimension_semantics=("parallel",)),
                cost_estimate=pl.CostEstimate(
                    flops=18 * padded, transcendentals=2 * padded,
                    bytes_accessed=in_bytes + padded * itemsize),
            )(x2d, t2d)
            flat = out2d.reshape(-1)
            if int(flat.size) != n:
                flat = flat[:n]
            return flat.reshape(logits.shape)

        if self.reduction == "mean":
            # loss.mean() = alpha * (bce_sum/n) * (focal_sum/n)
            scale_bce = 1.0 / float(n)
            scale_focal = self.alpha / float(n)
        elif self.reduction == "sum":
            # loss.sum() = alpha * bce_sum * focal_sum
            scale_bce = 1.0
            scale_focal = self.alpha
        else:
            raise ValueError(f"unknown reduction: {self.reduction}")

        # masking needed iff the grid covers more elements than are valid
        needs_mask = (grid_blocks * block_rows * _LANES) != n

        # TODO(synk): on v7x the serial "arbitrary" reduction could be split
        # across the two TensorCores via per-block partial sums; kept serial
        # here since the loss tensors in this pipeline are tiny.
        out = pl.pallas_call(
            functools.partial(_focal_sums_kernel, gamma=self.gamma,
                              scale_bce=scale_bce, scale_focal=scale_focal,
                              n_valid=n, needs_mask=needs_mask,
                              block_rows=block_rows),
            out_shape=jax.ShapeDtypeStruct((1,), jnp.float32),
            grid=grid,
            in_specs=[tile_spec, tile_spec],
            out_specs=pl.BlockSpec(memory_space=pltpu.MemorySpace.SMEM),
            scratch_shapes=[pltpu.SMEM((2,), jnp.float32)],
            compiler_params=pltpu.CompilerParams(
                dimension_semantics=("arbitrary",)),
            cost_estimate=pl.CostEstimate(
                flops=20 * padded, transcendentals=2 * padded,
                bytes_accessed=in_bytes + 4),
        )(x2d, t2d)
        return out[0]


def _focal_loss_ref(logits, targets, alpha, gamma, reduction="mean"):
    """Pure-JAX reference mirroring the PyTorch forward, for verification."""
    x = logits.astype(jnp.float32)
    t = targets.astype(jnp.float32)
    probs = jax.nn.sigmoid(x)
    bce_elem = jnp.maximum(x, 0.0) - x * t + jnp.log1p(jnp.exp(-jnp.abs(x)))
    if reduction == "mean":
        bce = jnp.mean(bce_elem)
    elif reduction == "sum":
        bce = jnp.sum(bce_elem)
    else:
        bce = bce_elem
    pt = probs * t + (1.0 - probs) * (1.0 - t)
    focal = (1.0 - pt) ** gamma
    loss = alpha * focal * bce
    if reduction == "mean":
        return jnp.mean(loss)
    elif reduction == "sum":
        return jnp.sum(loss)
    return loss


if __name__ == "__main__":
    key = jax.random.PRNGKey(0)
    k1, k2, k3, k4 = jax.random.split(key, 4)

    # exact sigmoid in the kernel -> tight tolerances vs the reference
    RTOL, ATOL = 2e-4, 1e-6

    # Shapes implied by the pipeline: logits from MultiLabelWrapper are
    # (batch, num_labels) with num_labels=5; targets are multi-hot floats.
    B, C = 8, 5
    logits = jax.random.normal(k1, (B, C), dtype=jnp.float32) * 2.0
    targets = (jax.random.uniform(k2, (B, C)) > 0.5).astype(jnp.float32)

    for red in ("mean", "sum", "none"):
        out = jax.block_until_ready(
            FocalLoss(alpha=0.25, gamma=2.0, reduction=red)(logits, targets))
        ref = _focal_loss_ref(logits, targets, 0.25, 2.0, reduction=red)
        assert jnp.allclose(out, ref, rtol=RTOL, atol=ATOL), (red, out, ref)

    # Larger small case: rows=17, block_rows=8 -> grid=3 with a ragged last
    # block (1 valid row of 8) plus a 64-element lane tail — exercises the
    # SMEM accumulator, pl.when-gated tail masking and dropped OOB writes.
    B2, C2 = 64, 33
    logits2 = jax.random.normal(k3, (B2, C2), dtype=jnp.float32) * 2.0
    targets2 = (jax.random.uniform(k4, (B2, C2)) > 0.5).astype(jnp.float32)
    for red in ("mean", "sum", "none"):
        out = jax.block_until_ready(
            FocalLoss(alpha=0.25, gamma=2.0, reduction=red,
                      max_block_rows=8)(logits2, targets2))
        ref = _focal_loss_ref(logits2, targets2, 0.25, 2.0, reduction=red)
        assert jnp.allclose(out, ref, rtol=RTOL, atol=ATOL), (red, out, ref)

    # non-integer gamma exercises the jnp.power fallback
    out = jax.block_until_ready(
        FocalLoss(alpha=0.5, gamma=2.5, reduction="mean")(logits, targets))
    ref = _focal_loss_ref(logits, targets, 0.5, 2.5, reduction="mean")
    assert jnp.allclose(out, ref, rtol=RTOL, atol=ATOL), (out, ref)

    print("KERNEL_OK")
</pallas_src>

<mosaic_0001>
module attributes {stable_mosaic.version = 11 : i64} {
  func.func @_focal_sums_kernel(%arg0: i32, %arg1: memref<1x128xf32, #tpu.memory_space<vmem>>, %arg2: memref<1x128xf32, #tpu.memory_space<vmem>>, %arg3: memref<1xf32, #tpu.memory_space<smem>>, %arg4: memref<2xf32, #tpu.memory_space<smem>>) attributes {dimension_semantics = [#tpu.dimension_semantics<arbitrary>], iteration_bounds = array<i64: 1>, scalar_prefetch = 0 : i64, scratch_operands = 1 : i64, tpu.core_type = #tpu.core_type<tc>, window_params = [{transform_indices = @transform_0, window_bounds = array<i64: 1, 128>}, {transform_indices = @transform_1, window_bounds = array<i64: 1, 128>}, {transform_indices = @transform_2, window_bounds = array<i64: 1>}]} {
    %c0_i32 = arith.constant 0 : i32
    %0 = arith.cmpi eq, %arg0, %c0_i32 : i32
    %1 = arith.extui %0 : i1 to i32
    %c0_i32_0 = arith.constant 0 : i32
    %2 = arith.cmpi ne, %1, %c0_i32_0 : i32
    scf.if %2 {
      %cst_16 = arith.constant 0.000000e+00 : f32
      %c0_17 = arith.constant 0 : index
      %41 = memref.load %arg4[%c0_17] : memref<2xf32, #tpu.memory_space<smem>>
      memref.store %cst_16, %arg4[%c0_17] : memref<2xf32, #tpu.memory_space<smem>>
      %cst_18 = arith.constant 0.000000e+00 : f32
      %c1 = arith.constant 1 : index
      %42 = memref.load %arg4[%c1] : memref<2xf32, #tpu.memory_space<smem>>
      memref.store %cst_18, %arg4[%c1] : memref<2xf32, #tpu.memory_space<smem>>
    } else {
    }
    %c0 = arith.constant 0 : index
    %c0_1 = arith.constant 0 : index
    %3 = vector.load %arg1[%c0, %c0_1] : memref<1x128xf32, #tpu.memory_space<vmem>>, vector<1x128xf32>
    %c0_2 = arith.constant 0 : index
    %c0_3 = arith.constant 0 : index
    %4 = vector.load %arg2[%c0_2, %c0_3] : memref<1x128xf32, #tpu.memory_space<vmem>>, vector<1x128xf32>
    %5 = math.absf %3 : vector<1x128xf32>
    %cst = arith.constant 0.000000e+00 : f32
    %6 = vector.broadcast %cst : f32 to vector<1x128xf32>
    %7 = arith.subf %6, %5 : vector<1x128xf32>
    %8 = math.exp %7 : vector<1x128xf32>
    %cst_4 = arith.constant 0.000000e+00 : f32
    %9 = vector.broadcast %cst_4 : f32 to vector<1x128xf32>
    %10 = arith.maximumf %3, %9 : vector<1x128xf32>
    %11 = arith.mulf %3, %4 : vector<1x128xf32>
    %12 = arith.subf %10, %11 : vector<1x128xf32>
    %13 = math.log1p %8 : vector<1x128xf32>
    %14 = arith.addf %12, %13 : vector<1x128xf32>
    %cst_5 = arith.constant 1.000000e+00 : f32
    %15 = vector.broadcast %cst_5 : f32 to vector<1x128xf32>
    %16 = arith.addf %15, %8 : vector<1x128xf32>
    %cst_6 = arith.constant 1.000000e+00 : f32
    %17 = vector.broadcast %cst_6 : f32 to vector<1x128xf32>
    %18 = arith.divf %17, %16 : vector<1x128xf32>
    %cst_7 = arith.constant 0.000000e+00 : f32
    %19 = vector.broadcast %cst_7 : f32 to vector<1x128xf32>
    %20 = arith.cmpf oge, %3, %19 : vector<1x128xf32>
    %cst_8 = arith.constant 1.000000e+00 : f32
    %21 = vector.broadcast %cst_8 : f32 to vector<1x128xf32>
    %22 = arith.select %20, %21, %8 : vector<1x128xi1>, vector<1x128xf32>
    %23 = arith.mulf %22, %18 : vector<1x128xf32>
    %24 = arith.subf %16, %22 : vector<1x128xf32>
    %25 = arith.mulf %24, %18 : vector<1x128xf32>
    %cst_9 = arith.constant 1.000000e+00 : f32
    %26 = vector.broadcast %cst_9 : f32 to vector<1x128xf32>
    %27 = arith.subf %26, %4 : vector<1x128xf32>
    %28 = arith.mulf %23, %27 : vector<1x128xf32>
    %29 = arith.mulf %25, %4 : vector<1x128xf32>
    %30 = arith.addf %28, %29 : vector<1x128xf32>
    %31 = arith.mulf %30, %30 : vector<1x128xf32>
    %c0_i32_10 = arith.constant 0 : i32
    %32 = arith.cmpi eq, %arg0, %c0_i32_10 : i32
    %33 = arith.extui %32 : i1 to i32
    %c0_i32_11 = arith.constant 0 : i32
    %34 = arith.cmpi ne, %33, %c0_i32_11 : i32
    scf.if %34 {
      %41 = tpu.iota {dimensions = array<i32: 0>} : vector<1x128xi32>
      %c1_i32 = arith.constant 1 : i32
      %42 = arith.muli %arg0, %c1_i32 : i32
      %43 = vector.broadcast %42 : i32 to vector<1x128xi32>
      %44 = arith.addi %41, %43 : vector<1x128xi32>
      %45 = tpu.iota {dimensions = array<i32: 1>} : vector<1x128xi32>
      %c128_i32 = arith.constant 128 : i32
      %46 = vector.broadcast %c128_i32 : i32 to vector<1x128xi32>
      %47 = arith.muli %44, %46 : vector<1x128xi32>
      %48 = arith.addi %47, %45 : vector<1x128xi32>
      %c40_i32 = arith.constant 40 : i32
      %49 = vector.broadcast %c40_i32 : i32 to vector<1x128xi32>
      %50 = arith.cmpi slt, %48, %49 : vector<1x128xi32>
      %c0_16 = arith.constant 0 : index
      %51 = memref.load %arg4[%c0_16] : memref<2xf32, #tpu.memory_space<smem>>
      %cst_17 = arith.constant 0.000000e+00 : f32
      %52 = vector.broadcast %cst_17 : f32 to vector<1x128xf32>
      %53 = arith.select %50, %14, %52 : vector<1x128xi1>, vector<1x128xf32>
      %54 = vector.shape_cast %53 : vector<1x128xf32> to vector<1x1x128xf32>
      %cst_18 = arith.constant dense<0.000000e+00> : vector<1xf32>
      %55 = vector.multi_reduction <add>, %54, %cst_18 [1, 2] : vector<1x1x128xf32> to vector<1xf32>
      %56 = vector.shape_cast %55 : vector<1xf32> to vector<1x1x1xf32>
      %57 = vector.extract %56[0, 0, 0] : f32 from vector<1x1x1xf32>
      %58 = arith.addf %51, %57 : f32
      %c0_19 = arith.constant 0 : index
      %59 = memref.load %arg4[%c0_19] : memref<2xf32, #tpu.memory_space<smem>>
      memref.store %58, %arg4[%c0_19] : memref<2xf32, #tpu.memory_space<smem>>
      %c1 = arith.constant 1 : index
      %60 = memref.load %arg4[%c1] : memref<2xf32, #tpu.memory_space<smem>>
      %cst_20 = arith.constant 0.000000e+00 : f32
      %61 = vector.broadcast %cst_20 : f32 to vector<1x128xf32>
      %62 = arith.select %50, %31, %61 : vector<1x128xi1>, vector<1x128xf32>
      %63 = vector.shape_cast %62 : vector<1x128xf32> to vector<1x1x128xf32>
      %cst_21 = arith.constant dense<0.000000e+00> : vector<1xf32>
      %64 = vector.multi_reduction <add>, %63, %cst_21 [1, 2] : vector<1x1x128xf32> to vector<1xf32>
      %65 = vector.shape_cast %64 : vector<1xf32> to vector<1x1x1xf32>
      %66 = vector.extract %65[0, 0, 0] : f32 from vector<1x1x1xf32>
      %67 = arith.addf %60, %66 : f32
      %c1_22 = arith.constant 1 : index
      %68 = memref.load %arg4[%c1_22] : memref<2xf32, #tpu.memory_space<smem>>
      memref.store %67, %arg4[%c1_22] : memref<2xf32, #tpu.memory_space<smem>>
    } else {
    }
    %c0_i32_12 = arith.constant 0 : i32
    %35 = arith.cmpi ne, %arg0, %c0_i32_12 : i32
    %36 = arith.extui %35 : i1 to i32
    %c0_i32_13 = arith.constant 0 : i32
    %37 = arith.cmpi ne, %36, %c0_i32_13 : i32
    scf.if %37 {
      %c0_16 = arith.constant 0 : index
      %41 = memref.load %arg4[%c0_16] : memref<2xf32, #tpu.memory_space<smem>>
      %42 = vector.shape_cast %14 : vector<1x128xf32> to vector<1x1x128xf32>
      %cst_17 = arith.constant dense<0.000000e+00> : vector<1xf32>
      %43 = vector.multi_reduction <add>, %42, %cst_17 [1, 2] : vector<1x1x128xf32> to vector<1xf32>
      %44 = vector.shape_cast %43 : vector<1xf32> to vector<1x1x1xf32>
      %45 = vector.extract %44[0, 0, 0] : f32 from vector<1x1x1xf32>
      %46 = arith.addf %41, %45 : f32
      %c0_18 = arith.constant 0 : index
      %47 = memref.load %arg4[%c0_18] : memref<2xf32, #tpu.memory_space<smem>>
      memref.store %46, %arg4[%c0_18] : memref<2xf32, #tpu.memory_space<smem>>
      %c1 = arith.constant 1 : index
      %48 = memref.load %arg4[%c1] : memref<2xf32, #tpu.memory_space<smem>>
      %49 = vector.shape_cast %31 : vector<1x128xf32> to vector<1x1x128xf32>
      %cst_19 = arith.constant dense<0.000000e+00> : vector<1xf32>
      %50 = vector.multi_reduction <add>, %49, %cst_19 [1, 2] : vector<1x1x128xf32> to vector<1xf32>
      %51 = vector.shape_cast %50 : vector<1xf32> to vector<1x1x1xf32>
      %52 = vector.extract %51[0, 0, 0] : f32 from vector<1x1x1xf32>
      %53 = arith.addf %48, %52 : f32
      %c1_20 = arith.constant 1 : index
      %54 = memref.load %arg4[%c1_20] : memref<2xf32, #tpu.memory_space<smem>>
      memref.store %53, %arg4[%c1_20] : memref<2xf32, #tpu.memory_space<smem>>
    } else {
    }
    %c0_i32_14 = arith.constant 0 : i32
    %38 = arith.cmpi eq, %arg0, %c0_i32_14 : i32
    %39 = arith.extui %38 : i1 to i32
    %c0_i32_15 = arith.constant 0 : i32
    %40 = arith.cmpi ne, %39, %c0_i32_15 : i32
    scf.if %40 {
      %c0_16 = arith.constant 0 : index
      %41 = memref.load %arg4[%c0_16] : memref<2xf32, #tpu.memory_space<smem>>
      %cst_17 = arith.constant 2.500000e-02 : f32
      %42 = arith.mulf %cst_17, %41 : f32
      %c1 = arith.constant 1 : index
      %43 = memref.load %arg4[%c1] : memref<2xf32, #tpu.memory_space<smem>>
      %cst_18 = arith.constant 6.250000e-03 : f32
      %44 = arith.mulf %cst_18, %43 : f32
      %45 = arith.mulf %42, %44 : f32
      %c0_19 = arith.constant 0 : index
      %46 = memref.load %arg3[%c0_19] : memref<1xf32, #tpu.memory_space<smem>>
      memref.store %45, %arg3[%c0_19] : memref<1xf32, #tpu.memory_space<smem>>
    } else {
    }
    return
  }
  func.func @transform_0(%arg0: i32) -> (i32, i32) {
    %c0_i32 = arith.constant 0 : i32
    %c0_i32_0 = arith.constant 0 : i32
    return %arg0, %c0_i32 : i32, i32
  }
  func.func @transform_1(%arg0: i32) -> (i32, i32) {
    %c0_i32 = arith.constant 0 : i32
    %c0_i32_0 = arith.constant 0 : i32
    return %arg0, %c0_i32 : i32, i32
  }
  func.func @transform_2(%arg0: i32) -> i32 {
    %c0_i32 = arith.constant 0 : i32
    %c0_i32_0 = arith.constant 0 : i32
    return %c0_i32 : i32
  }
}

</mosaic_0001>

<llo_original>
// kernel: tpu_custom_call.1
$region0: #{tpu_custom_call.1}
  #allocation0 [shape = 'u32[]', space=smem, size = 0x4, offset = 0x4, fixed_abs, tag = 'smem constant byte address 0x4 - core index']
  #allocation1 [shape = 'u32[144,128]{1,0:T(1,128)}', space=vmem, size = 0x12000, scoped, tag = 'internal scratch']
  #allocation2 [shape = 'f32[2]{0:T(128)}', space=smem, size = 0x200, scoped, tag = 'scratch operand']
  %s0 = inlined_call_operand.hbm [shape: f32[1,128], index: 0, kind: input, shape index: {}]
  %s1 = inlined_call_operand.vmem [shape: f32[1,128], index: 1, kind: input, shape index: {}]
  %s2 = inlined_call_operand.hbm [shape: f32[1], index: 2, kind: output, shape index: {}]
  %s3 = sld [smem:[#allocation0]]
  $region38: #{tpu_custom_call.1} parent=0
    _
  %s5 = ssub.s32 1, %s3
  %s6 = scalar_select 0, %s5, %s3
  $region1: #{tpu_custom_call.1} parent=0
    #allocation3 [shape = 'u8[512]{0}', space=vmem, size = 0x400, scoped, tag = 'input window, operand 0, single buffered']
    #allocation4 [shape = 's32[1]{0}', space=sflag, size = 0x4, scoped, tag = 'scoped memory for tpu_custom_call.1']
    #allocation5 [shape = 's32[1]{0}', space=sflag, size = 0x4, scoped, tag = 'scoped memory for tpu_custom_call.1']
    #allocation6 [shape = 'u8[512]{0}', space=smem, size = 0x200, scoped, tag = 'output window, operand 0, single buffered']
    %7 = vsyncpa [#allocation4], 0
    %8 = vsyncpa [#allocation5], 0
    // Predicated region
    $region2: #{tpu_custom_call.1} parent=1 // pred_check
      _
    $region3: #{tpu_custom_call.1} parent=1 // pred_check_branch
      %10 = sbr.rel (0) target = $region5
    $region4: #{tpu_custom_call.1} parent=1 // pred_region
      %s12 = ssub.s32 16, 16
      %13 = vsyncadd [#allocation4], %s12
      %s15 = sshll.u32 [#allocation3], 4
      %s16 = int_to_ptr.vmem [resolvable:$true] %s15
      %18 = dma.hbm_to_vmem [thread:$0]  %s0, 16, %s16, [#allocation4]
    $region5: #{tpu_custom_call.1} parent=1 // pred_fallthru
      _
    // Predicated region
    $region6: #{tpu_custom_call.1} parent=1 // pred_check
      _
    $region7: #{tpu_custom_call.1} parent=1 // pred_check_branch
      %20 = sbr.rel (0) target = $region9
    $region8: #{tpu_custom_call.1} parent=1 // pred_region
      _
    $region9: #{tpu_custom_call.1} parent=1 // pred_fallthru
      _
    // Predicated region
    $region10: #{tpu_custom_call.1} parent=1 // pred_check
      _
    $region11: #{tpu_custom_call.1} parent=1 // pred_check_branch
      %22 = sbr.rel (0) target = $region13
    $region12: #{tpu_custom_call.1} parent=1 // pred_region
      %23 = dma.done [#allocation4], 16
    $region13: #{tpu_custom_call.1} parent=1 // pred_fallthru
      _
    %p24 = scmp.eq.s32.totalorder 0, 0
    // Predicated region
    $region14: #{tpu_custom_call.1} parent=1 // pred_check
      %p25 = pneg %p24
    $region15: #{tpu_custom_call.1} parent=1 // pred_check_branch
      %27 = sbr.rel (%p25) target = $region17
    $region16: #{tpu_custom_call.1} parent=1 // pred_region
      %s28 = scalar_lea.smem [#allocation2], 0
      %29 = sst [smem:[%s28]] 0.0
      %s30 = scalar_lea.smem [#allocation2], 1
      %31 = sst [smem:[%s30]] 0.0
    $region17: #{tpu_custom_call.1} parent=1 // pred_fallthru
      _
    %v32 = vld [vmem:[#allocation3] sm:$0x1]
    %v33 = vld [vmem:[%s1] sm:$0x1]
    %v34 = vand.u32 2147483647, %v32
    %v35 = vsub.f32 0.0, %v34
    %v36 = vmul.f32 %v35, 1.442695
    %v37 = vpow.pop %v36
    %v38 = vmax.f32 %v32, 0.0
    %v39 = vmul.f32 %v32, %v33
    %v40 = vsub.f32 %v38, %v39
    %v41 = vadd.f32 %v37, 1.0
    %v42 = vlog2.pop %v41
    %v43 = vmul.f32 %v42, 0.6931472
    %v44 = vmul.f32 -0.5, %v37
    %v45 = vadd.f32 %v44, 1.0
    %v46 = vmul.f32 %v45, %v37
    %v47 = vand.u32 2147483647, %v37
    %vm48 = vcmp.lt.f32.partialorder %v47, 0.0004427343
    %v49 = vsel %vm48, %v46, %v43
    %v50 = vadd.f32 %v40, %v49
    %v51 = vadd.f32 %v37, 1.0
    %v52 = vrcp.pop %v51
    %v53 = vmul.f32 1.0, %v52
    %vm54 = vcmp.ge.f32.partialorder %v32, 0.0
    %v55 = vsel %vm54, 1.0, %v37
    %v56 = vmul.f32 %v55, %v53
    %v57 = vsub.f32 %v51, %v55
    %v58 = vmul.f32 %v57, %v53
    %v59 = vsub.f32 1.0, %v33
    %v60 = vmul.f32 %v56, %v59
    %v61 = vmul.f32 %v58, %v33
    %v62 = vadd.f32 %v60, %v61
    %v63 = vmul.f32 %v62, %v62
    // Predicated region
    $region18: #{tpu_custom_call.1} parent=1 // pred_check
      %p64 = pneg %p24
    $region19: #{tpu_custom_call.1} parent=1 // pred_check_branch
      %66 = sbr.rel (%p64) target = $region21
    $region20: #{tpu_custom_call.1} parent=1 // pred_region
      %v67 = vlaneseq
      %v68 = vshrl.u32 %v67, 7
      %v69 = vstv 0
      %v70 = vadd.s32 %v68, %v69
      %v71 = vlaneseq
      %v72 = vand.u32 %v71, 127
      %v73 = vmul.u32 %v70, 128
      %v74 = vadd.s32 %v73, %v72
      %vm75 = vcmp.lt.s32.totalorder %v74, 40
      %s76 = sld [smem:[#allocation2]]
      %v77 = vsel %vm75, %v50, 0.0
      %vm78 = vcmask 1040384
      %v79 = vsel %vm78, %v77, 0.0
      %80 = vadd.xlane.f32.xlu0 %v79
      %v81 = vpop.xlane.xlu0 %80
      %v82 = vrot.slane %v81, 4
      %v83 = vadd.f32 %v81, %v82
      %v84 = vrot.slane %v83, 2
      %v85 = vadd.f32 %v83, %v84
      %v86 = vrot.slane %v85, 1
      %v87 = vadd.f32 %v85, %v86
      %s88 = vtos %v87
      %s89 = sadd.f32 %s76, %s88
      %s90 = scalar_lea.smem [#allocation2], 0
      %91 = sst [smem:[%s90]] %s89
      %s92 = sld [smem:[#allocation2 + $0x1]]
      %v93 = vsel %vm75, %v63, 0.0
      %v94 = vsel %vm78, %v93, 0.0
      %95 = vadd.xlane.f32.xlu0 %v94
      %v96 = vpop.xlane.xlu0 %95
      %v97 = vrot.slane %v96, 4
      %v98 = vadd.f32 %v96, %v97
      %v99 = vrot.slane %v98, 2
      %v100 = vadd.f32 %v98, %v99
      %v101 = vrot.slane %v100, 1
      %v102 = vadd.f32 %v100, %v101
      %s103 = vtos %v102
      %s104 = sadd.f32 %s92, %s103
      %s105 = scalar_lea.smem [#allocation2], 1
      %106 = sst [smem:[%s105]] %s104
    $region21: #{tpu_custom_call.1} parent=1 // pred_fallthru
      _
    %p107 = scmp.ne.s32.totalorder 0, 0
    // Predicated region
    $region22: #{tpu_custom_call.1} parent=1 // pred_check
      %p108 = pneg %p107
    $region23: #{tpu_custom_call.1} parent=1 // pred_check_branch
      %110 = sbr.rel (%p108) target = $region25
    $region24: #{tpu_custom_call.1} parent=1 // pred_region
      %s111 = sld [smem:[#allocation2]]
      %vm112 = vcmask 1040384
      %v113 = vsel %vm112, %v50, 0.0
      %114 = vadd.xlane.f32.xlu0 %v113
      %v115 = vpop.xlane.xlu0 %114
      %v116 = vrot.slane %v115, 4
      %v117 = vadd.f32 %v115, %v116
      %v118 = vrot.slane %v117, 2
      %v119 = vadd.f32 %v117, %v118
      %v120 = vrot.slane %v119, 1
      %v121 = vadd.f32 %v119, %v120
      %s122 = vtos %v121
      %s123 = sadd.f32 %s111, %s122
      %s124 = scalar_lea.smem [#allocation2], 0
      %125 = sst [smem:[%s124]] %s123
      %s126 = sld [smem:[#allocation2 + $0x1]]
      %v127 = vsel %vm112, %v63, 0.0
      %128 = vadd.xlane.f32.xlu0 %v127
      %v129 = vpop.xlane.xlu0 %128
      %v130 = vrot.slane %v129, 4
      %v131 = vadd.f32 %v129, %v130
      %v132 = vrot.slane %v131, 2
      %v133 = vadd.f32 %v131, %v132
      %v134 = vrot.slane %v133, 1
      %v135 = vadd.f32 %v133, %v134
      %s136 = vtos %v135
      %s137 = sadd.f32 %s126, %s136
      %s138 = scalar_lea.smem [#allocation2], 1
      %139 = sst [smem:[%s138]] %s137
    $region25: #{tpu_custom_call.1} parent=1 // pred_fallthru
      _
    // Predicated region
    $region26: #{tpu_custom_call.1} parent=1 // pred_check
      %p140 = pneg %p24
    $region27: #{tpu_custom_call.1} parent=1 // pred_check_branch
      %142 = sbr.rel (%p140) target = $region29
    $region28: #{tpu_custom_call.1} parent=1 // pred_region
      %s143 = sld [smem:[#allocation2]]
      %s144 = smul.f32 %s143, 0.025
      %s145 = sld [smem:[#allocation2 + $0x1]]
      %s146 = smul.f32 %s145, 0.00625
      %s147 = smul.f32 %s144, %s146
      %s148 = scalar_lea.smem [#allocation6], 0
      %149 = sst [smem:[%s148]] %s147
    $region29: #{tpu_custom_call.1} parent=1 // pred_fallthru
      _
    // Predicated region
    $region30: #{tpu_custom_call.1} parent=1 // pred_check
      _
    $region31: #{tpu_custom_call.1} parent=1 // pred_check_branch
      %151 = sbr.rel (0) target = $region33
    $region32: #{tpu_custom_call.1} parent=1 // pred_region
      %s153 = ssub.s32 16, 16
      %154 = vsyncadd [#allocation5], %s153
      %157 = dma.smem_to_hbm [#allocation6], 16, %s2, [#allocation5]
    $region33: #{tpu_custom_call.1} parent=1 // pred_fallthru
      _
    // Predicated region
    $region34: #{tpu_custom_call.1} parent=1 // pred_check
      _
    $region35: #{tpu_custom_call.1} parent=1 // pred_check_branch
      %159 = sbr.rel (0) target = $region37
    $region36: #{tpu_custom_call.1} parent=1 // pred_region
      %160 = dma.done [#allocation5], 16
    $region37: #{tpu_custom_call.1} parent=1 // pred_fallthru
      _
    %161 = sfence
    %162 = vsyncpa [#allocation4], 1
    %163 = vsyncpa [#allocation5], 1

</llo_original>
